<compile_context>
chip_gen: v7x
topology: tpu7x:2x2x1
jax: 0.10.0
libtpu: 0.0.40
codegen_flags: <defaults>
</compile_context>

<pallas_src>
import functools

import jax
import jax.numpy as jnp
from jax.experimental import pallas as pl
from jax.experimental.pallas import tpu as pltpu

HIDDEN_DIM = 128
LN_EPS = 1e-5
LANE = 128


def _round_up(x, m):
    return (x + m - 1) // m * m


def _num_tensorcores():
    """Best-effort TensorCore count (2 only on v7x-class chips)."""
    try:
        kind = (getattr(jax.devices()[0], "device_kind", "") or "").lower()
        if "v7" in kind:
            return 2
    except Exception:
        pass
    return 1


def rnn_kernel(x_ref,
               w1_ref, b1_ref,
               w2_ref, b2_ref,
               w3_ref, b3_ref,
               m_ref,
               o_ref,
               *, ln_via_mxu=True):
    cdt = w1_ref.dtype  # MXU compute dtype (f32 or bf16); accumulation is f32.

    # Hoist small (1, N) biases once; elementwise math stays f32.
    b1 = b1_ref[...].astype(jnp.float32)
    b2 = b2_ref[...].astype(jnp.float32)
    b3 = b3_ref[...].astype(jnp.float32)

    if ln_via_mxu:
        m = m_ref[...]  # (H, H) f32, every entry = 1/H

        def layer_norm(h):
            # Two-pass moments via the MXU (keeps XLU free, no cancellation).
            mean = jnp.dot(h, m, preferred_element_type=jnp.float32)
            d = h - mean
            var = jnp.dot(d * d, m, preferred_element_type=jnp.float32)
            return d * jax.lax.rsqrt(var + LN_EPS)
    else:
        def layer_norm(h):
            mean = jnp.mean(h, axis=-1, keepdims=True)
            d = h - mean
            var = jnp.mean(d * d, axis=-1, keepdims=True)
            return d * jax.lax.rsqrt(var + LN_EPS)

    # fc1 -> ReLU -> LayerNorm (affine folded into w2/b2)
    x = x_ref[...].astype(cdt)
    h = jnp.dot(x, w1_ref[...], preferred_element_type=jnp.float32) + b1
    h = layer_norm(jnp.maximum(h, 0.0))

    # fc2 -> ReLU -> LayerNorm (affine folded into w3/b3)
    h = jnp.dot(h.astype(cdt), w2_ref[...], preferred_element_type=jnp.float32) + b2
    h = layer_norm(jnp.maximum(h, 0.0))

    # fc3 (lane-dense padded output -> unmasked vst)
    out = jnp.dot(h.astype(cdt), w3_ref[...], preferred_element_type=jnp.float32) + b3
    o_ref[...] = out.astype(o_ref.dtype)


def rnn_forward(inputs, params, *, tb=1024, io_dtype=None, ln_via_mxu=True):
    """Fused Pallas forward. inputs: (B, input_dim). Returns (q_values, None)."""
    B, input_dim = inputs.shape
    hidden = params["w1"].shape[1]
    output_dim = params["w3"].shape[1]
    assert hidden % LANE == 0, "hidden dim must be a multiple of 128"

    f32 = jnp.float32

    # --- fold LayerNorm affines (gamma, beta) into the NEXT linear layer ---
    #   LN(h)*g + be  followed by  y@W + b   ==   LN(h) @ (g[:,None]*W) + (be@W + b)
    g1 = params["g1"].astype(f32).reshape(hidden)
    be1 = params["be1"].astype(f32).reshape(1, hidden)
    g2 = params["g2"].astype(f32).reshape(hidden)
    be2 = params["be2"].astype(f32).reshape(1, hidden)

    w2_raw = params["w2"].astype(f32)
    w3_raw = params["w3"].astype(f32)
    b2 = be1 @ w2_raw + params["b2"].astype(f32).reshape(1, hidden)
    b3 = be2 @ w3_raw + params["b3"].astype(f32).reshape(1, output_dim)
    w2 = (g1[:, None] * w2_raw).astype(params["w2"].dtype)
    w3 = (g2[:, None] * w3_raw).astype(params["w3"].dtype)
    w1 = params["w1"]
    b1 = params["b1"].astype(f32).reshape(1, hidden)

    # --- output lane padding (keeps the final store lane-dense / unmasked) --
    out_p = _round_up(output_dim, LANE)
    if out_p != output_dim:
        w3 = jnp.zeros((hidden, out_p), w3.dtype).at[:, :output_dim].set(w3)
        b3 = jnp.zeros((1, out_p), f32).at[:, :output_dim].set(b3)

    # --- activation I/O dtype (bf16 halves HBM traffic on v5e/v6e) ---------
    x = inputs if io_dtype is None else inputs.astype(io_dtype)
    out_dtype = x.dtype

    # --- batch tiling: big MXU-filling tiles, ragged tail handled by Pallas -
    tb_eff = min(_round_up(tb, 8), _round_up(B, 8))
    # v7x megacore only: ensure >=2 parallel grid steps, but only if each
    # half-tile still keeps >=256 rows feeding the MXU.
    if _num_tensorcores() >= 2 and pl.cdiv(B, tb_eff) < 2 and B >= 512:
        tb_eff = _round_up(pl.cdiv(B, 2), 8)
    grid = (pl.cdiv(B, tb_eff),)

    # Constant reduction matrix for the MXU-based LayerNorm moments.
    ones_h = jnp.full((hidden, hidden), 1.0 / hidden, dtype=f32)

    args = (x, w1, b1, w2, b2, w3, b3, ones_h)

    # Advisory cost estimate so XLA schedules the surrounding graph sensibly.
    flops = 2 * B * (input_dim * hidden + hidden * hidden + hidden * out_p)
    if ln_via_mxu:
        flops += 4 * 2 * B * hidden * hidden  # 2 reduction matmuls per LN
    param_bytes = sum(int(a.size) * a.dtype.itemsize for a in args[1:])
    bytes_accessed = (int(x.size) * x.dtype.itemsize
                      + B * out_p * jnp.dtype(out_dtype).itemsize
                      + param_bytes)
    cost = pl.CostEstimate(flops=int(flops),
                           transcendentals=int(2 * B),
                           bytes_accessed=int(bytes_accessed))

    full = lambda shape: pl.BlockSpec(shape, lambda i: (0, 0))

    out = pl.pallas_call(
        functools.partial(rnn_kernel, ln_via_mxu=ln_via_mxu),
        out_shape=jax.ShapeDtypeStruct((B, out_p), out_dtype),
        grid_spec=pltpu.PrefetchScalarGridSpec(
            num_scalar_prefetch=0,
            grid=grid,
            in_specs=[
                pl.BlockSpec((tb_eff, input_dim), lambda i: (i, 0)),  # x (batch-tiled)
                full((input_dim, hidden)),                            # w1
                full((1, hidden)),                                    # b1
                full((hidden, hidden)),                               # w2 (gamma1 folded)
                full((1, hidden)),                                    # b2 (beta1 folded)
                full((hidden, out_p)),                                # w3 (gamma2 folded, lane-padded)
                full((1, out_p)),                                     # b3 (beta2 folded, lane-padded)
                full((hidden, hidden)),                               # ones/H reduction matrix
            ],
            out_specs=pl.BlockSpec((tb_eff, out_p), lambda i: (i, 0)),
        ),
        compiler_params=pltpu.CompilerParams(
            dimension_semantics=("parallel",)),
        cost_estimate=cost,
    )(*args)

    q_values = out[:, :output_dim] if out_p != output_dim else out
    # RNN.forward returns (q_values, hidden_state=None)
    return q_values, None


def init_params(key, input_dim, hidden, output_dim):
    """Deterministic parameter init (uniform, similar in spirit to nn.Linear)."""
    ks = jax.random.split(key, 3)

    def lin(k, fan_in, fan_out):
        bound = 1.0 / jnp.sqrt(fan_in)
        kw, kb = jax.random.split(k)
        w = jax.random.uniform(kw, (fan_in, fan_out), jnp.float32, -bound, bound)
        b = jax.random.uniform(kb, (1, fan_out), jnp.float32, -bound, bound)
        return w, b

    w1, b1 = lin(ks[0], input_dim, hidden)
    w2, b2 = lin(ks[1], hidden, hidden)
    w3, b3 = lin(ks[2], hidden, output_dim)
    return {
        "w1": w1, "b1": b1,
        # LayerNorm defaults in torch: gamma=1, beta=0
        "g1": jnp.ones((1, hidden), jnp.float32),
        "be1": jnp.zeros((1, hidden), jnp.float32),
        "w2": w2, "b2": b2,
        "g2": jnp.ones((1, hidden), jnp.float32),
        "be2": jnp.zeros((1, hidden), jnp.float32),
        "w3": w3, "b3": b3,
    }


def reference_forward(inputs, p):
    """Pure-JAX f32 reference matching the torch semantics."""
    def ln(h, g, b):
        m = jnp.mean(h, axis=-1, keepdims=True)
        v = jnp.mean((h - m) ** 2, axis=-1, keepdims=True)
        return (h - m) / jnp.sqrt(v + LN_EPS) * g + b

    h = jnp.maximum(inputs @ p["w1"] + p["b1"], 0.0)
    h = ln(h, p["g1"], p["be1"])
    h = jnp.maximum(h @ p["w2"] + p["b2"], 0.0)
    h = ln(h, p["g2"], p["be2"])
    return h @ p["w3"] + p["b3"]


if __name__ == "__main__":
    key = jax.random.PRNGKey(0)
    k_in, k_par, k_g1, k_b1, k_g2, k_b2 = jax.random.split(key, 6)

    B, input_dim, output_dim = 16, 64, 32
    inputs = jax.random.normal(k_in, (B, input_dim), jnp.float32)
    params = init_params(k_par, input_dim, HIDDEN_DIM, output_dim)
    # Non-trivial gamma/beta so the affine-folding path is actually exercised.
    params["g1"] = 1.0 + 0.1 * jax.random.normal(k_g1, (1, HIDDEN_DIM), jnp.float32)
    params["be1"] = 0.1 * jax.random.normal(k_b1, (1, HIDDEN_DIM), jnp.float32)
    params["g2"] = 1.0 + 0.1 * jax.random.normal(k_g2, (1, HIDDEN_DIM), jnp.float32)
    params["be2"] = 0.1 * jax.random.normal(k_b2, (1, HIDDEN_DIM), jnp.float32)

    ref = reference_forward(inputs, params)

    # f32 weights, MXU-based LayerNorm reductions.
    out, hidden_state = rnn_forward(inputs, params)
    out = jax.block_until_ready(out)
    assert out.shape == (B, output_dim)
    assert hidden_state is None
    assert jnp.allclose(out, ref, atol=2e-2, rtol=2e-2), "f32 (MXU-LN) mismatch vs reference"

    # f32 weights, XLU reduction fallback path.
    out_xlu, _ = rnn_forward(inputs, params, ln_via_mxu=False)
    out_xlu = jax.block_until_ready(out_xlu)
    assert jnp.allclose(out_xlu, ref, atol=2e-2, rtol=2e-2), "f32 (XLU-LN) mismatch vs reference"

    # bf16 weights + bf16 activation I/O (v5e/v6e bandwidth config);
    # bias/LN math and MXU accumulation stay f32 inside the kernel.
    params_bf16 = dict(params)
    for k in ("w1", "w2", "w3"):
        params_bf16[k] = params[k].astype(jnp.bfloat16)
    out_bf16, _ = rnn_forward(inputs, params_bf16, io_dtype=jnp.bfloat16)
    out_bf16 = jax.block_until_ready(out_bf16)
    assert out_bf16.dtype == jnp.bfloat16
    assert jnp.allclose(out_bf16.astype(jnp.float32), ref, atol=1e-1, rtol=1e-1), \
        "bf16 mismatch vs reference"

    print("KERNEL_OK")
</pallas_src>

<mosaic_0001>
module attributes {stable_mosaic.version = 11 : i64} {
  func.func @rnn_kernel(%arg0: i32, %arg1: memref<16x64xf32, #tpu.memory_space<vmem>>, %arg2: memref<64x128xf32, #tpu.memory_space<vmem>>, %arg3: memref<1x128xf32, #tpu.memory_space<vmem>>, %arg4: memref<128x128xf32, #tpu.memory_space<vmem>>, %arg5: memref<1x128xf32, #tpu.memory_space<vmem>>, %arg6: memref<128x128xf32, #tpu.memory_space<vmem>>, %arg7: memref<1x128xf32, #tpu.memory_space<vmem>>, %arg8: memref<128x128xf32, #tpu.memory_space<vmem>>, %arg9: memref<16x128xf32, #tpu.memory_space<vmem>>) attributes {dimension_semantics = [#tpu.dimension_semantics<parallel>], iteration_bounds = array<i64: 1>, scalar_prefetch = 0 : i64, scratch_operands = 0 : i64, tpu.core_type = #tpu.core_type<tc>, window_params = [{transform_indices = @transform_0, window_bounds = array<i64: 16, 64>}, {pipeline_mode = #tpu.pipeline_mode<synchronous>, transform_indices = @transform_1, window_bounds = array<i64: 64, 128>}, {pipeline_mode = #tpu.pipeline_mode<synchronous>, transform_indices = @transform_2, window_bounds = array<i64: 1, 128>}, {pipeline_mode = #tpu.pipeline_mode<synchronous>, transform_indices = @transform_3, window_bounds = array<i64: 128, 128>}, {pipeline_mode = #tpu.pipeline_mode<synchronous>, transform_indices = @transform_4, window_bounds = array<i64: 1, 128>}, {pipeline_mode = #tpu.pipeline_mode<synchronous>, transform_indices = @transform_5, window_bounds = array<i64: 128, 128>}, {pipeline_mode = #tpu.pipeline_mode<synchronous>, transform_indices = @transform_6, window_bounds = array<i64: 1, 128>}, {pipeline_mode = #tpu.pipeline_mode<synchronous>, transform_indices = @transform_7, window_bounds = array<i64: 128, 128>}, {transform_indices = @transform_8, window_bounds = array<i64: 16, 128>}]} {
    %c0 = arith.constant 0 : index
    %c0_0 = arith.constant 0 : index
    %0 = vector.load %arg3[%c0, %c0_0] : memref<1x128xf32, #tpu.memory_space<vmem>>, vector<1x128xf32>
    %c0_1 = arith.constant 0 : index
    %c0_2 = arith.constant 0 : index
    %1 = vector.load %arg5[%c0_1, %c0_2] : memref<1x128xf32, #tpu.memory_space<vmem>>, vector<1x128xf32>
    %c0_3 = arith.constant 0 : index
    %c0_4 = arith.constant 0 : index
    %2 = vector.load %arg7[%c0_3, %c0_4] : memref<1x128xf32, #tpu.memory_space<vmem>>, vector<1x128xf32>
    %c0_5 = arith.constant 0 : index
    %c0_6 = arith.constant 0 : index
    %3 = vector.load %arg8[%c0_5, %c0_6] : memref<128x128xf32, #tpu.memory_space<vmem>>, vector<128x128xf32>
    %c0_7 = arith.constant 0 : index
    %c0_8 = arith.constant 0 : index
    %4 = vector.load %arg1[%c0_7, %c0_8] : memref<16x64xf32, #tpu.memory_space<vmem>>, vector<16x64xf32>
    %c0_9 = arith.constant 0 : index
    %c0_10 = arith.constant 0 : index
    %5 = vector.load %arg2[%c0_9, %c0_10] : memref<64x128xf32, #tpu.memory_space<vmem>>, vector<64x128xf32>
    %cst = arith.constant dense<0.000000e+00> : vector<16x128xf32>
    %6 = tpu.matmul %4, %5, %cst {dimension_numbers = #tpu.dot_dimension_numbers<[1], [0], [0], [1], [0, 0, 1, 1], [], []>} : vector<16x64xf32>, vector<64x128xf32>, vector<16x128xf32> -> vector<16x128xf32>
    %7 = vector.broadcast %0 : vector<1x128xf32> to vector<16x128xf32>
    %8 = arith.addf %6, %7 : vector<16x128xf32>
    %cst_11 = arith.constant 0.000000e+00 : f32
    %9 = vector.broadcast %cst_11 : f32 to vector<16x128xf32>
    %10 = arith.maximumf %8, %9 : vector<16x128xf32>
    %cst_12 = arith.constant dense<0.000000e+00> : vector<16x128xf32>
    %11 = tpu.matmul %10, %3, %cst_12 {dimension_numbers = #tpu.dot_dimension_numbers<[1], [0], [0], [1], [0, 0, 1, 1], [], []>} : vector<16x128xf32>, vector<128x128xf32>, vector<16x128xf32> -> vector<16x128xf32>
    %12 = arith.subf %10, %11 : vector<16x128xf32>
    %13 = arith.mulf %12, %12 : vector<16x128xf32>
    %cst_13 = arith.constant dense<0.000000e+00> : vector<16x128xf32>
    %14 = tpu.matmul %13, %3, %cst_13 {dimension_numbers = #tpu.dot_dimension_numbers<[1], [0], [0], [1], [0, 0, 1, 1], [], []>} : vector<16x128xf32>, vector<128x128xf32>, vector<16x128xf32> -> vector<16x128xf32>
    %cst_14 = arith.constant 9.99999974E-6 : f32
    %15 = vector.broadcast %cst_14 : f32 to vector<16x128xf32>
    %16 = arith.addf %14, %15 : vector<16x128xf32>
    %17 = math.rsqrt %16 : vector<16x128xf32>
    %18 = arith.mulf %12, %17 : vector<16x128xf32>
    %c0_15 = arith.constant 0 : index
    %c0_16 = arith.constant 0 : index
    %19 = vector.load %arg4[%c0_15, %c0_16] : memref<128x128xf32, #tpu.memory_space<vmem>>, vector<128x128xf32>
    %cst_17 = arith.constant dense<0.000000e+00> : vector<16x128xf32>
    %20 = tpu.matmul %18, %19, %cst_17 {dimension_numbers = #tpu.dot_dimension_numbers<[1], [0], [0], [1], [0, 0, 1, 1], [], []>} : vector<16x128xf32>, vector<128x128xf32>, vector<16x128xf32> -> vector<16x128xf32>
    %21 = vector.broadcast %1 : vector<1x128xf32> to vector<16x128xf32>
    %22 = arith.addf %20, %21 : vector<16x128xf32>
    %cst_18 = arith.constant 0.000000e+00 : f32
    %23 = vector.broadcast %cst_18 : f32 to vector<16x128xf32>
    %24 = arith.maximumf %22, %23 : vector<16x128xf32>
    %cst_19 = arith.constant dense<0.000000e+00> : vector<16x128xf32>
    %25 = tpu.matmul %24, %3, %cst_19 {dimension_numbers = #tpu.dot_dimension_numbers<[1], [0], [0], [1], [0, 0, 1, 1], [], []>} : vector<16x128xf32>, vector<128x128xf32>, vector<16x128xf32> -> vector<16x128xf32>
    %26 = arith.subf %24, %25 : vector<16x128xf32>
    %27 = arith.mulf %26, %26 : vector<16x128xf32>
    %cst_20 = arith.constant dense<0.000000e+00> : vector<16x128xf32>
    %28 = tpu.matmul %27, %3, %cst_20 {dimension_numbers = #tpu.dot_dimension_numbers<[1], [0], [0], [1], [0, 0, 1, 1], [], []>} : vector<16x128xf32>, vector<128x128xf32>, vector<16x128xf32> -> vector<16x128xf32>
    %cst_21 = arith.constant 9.99999974E-6 : f32
    %29 = vector.broadcast %cst_21 : f32 to vector<16x128xf32>
    %30 = arith.addf %28, %29 : vector<16x128xf32>
    %31 = math.rsqrt %30 : vector<16x128xf32>
    %32 = arith.mulf %26, %31 : vector<16x128xf32>
    %c0_22 = arith.constant 0 : index
    %c0_23 = arith.constant 0 : index
    %33 = vector.load %arg6[%c0_22, %c0_23] : memref<128x128xf32, #tpu.memory_space<vmem>>, vector<128x128xf32>
    %cst_24 = arith.constant dense<0.000000e+00> : vector<16x128xf32>
    %34 = tpu.matmul %32, %33, %cst_24 {dimension_numbers = #tpu.dot_dimension_numbers<[1], [0], [0], [1], [0, 0, 1, 1], [], []>} : vector<16x128xf32>, vector<128x128xf32>, vector<16x128xf32> -> vector<16x128xf32>
    %35 = vector.broadcast %2 : vector<1x128xf32> to vector<16x128xf32>
    %36 = arith.addf %34, %35 : vector<16x128xf32>
    %c0_25 = arith.constant 0 : index
    %c0_26 = arith.constant 0 : index
    %37 = vector.load %arg9[%c0_25, %c0_26] : memref<16x128xf32, #tpu.memory_space<vmem>>, vector<16x128xf32>
    tpu.vector_store %arg9[%c0_25, %c0_26], %36 {strides = array<i32>} : memref<16x128xf32, #tpu.memory_space<vmem>>, vector<16x128xf32>,
    return
  }
  func.func @transform_0(%arg0: i32) -> (i32, i32) {
    %c0_i32 = arith.constant 0 : i32
    %c0_i32_0 = arith.constant 0 : i32
    return %arg0, %c0_i32 : i32, i32
  }
  func.func @transform_1(%arg0: i32) -> (i32, i32) {
    %c0_i32 = arith.constant 0 : i32
    %c0_i32_0 = arith.constant 0 : i32
    %c0_i32_1 = arith.constant 0 : i32
    return %c0_i32, %c0_i32_0 : i32, i32
  }
  func.func @transform_2(%arg0: i32) -> (i32, i32) {
    %c0_i32 = arith.constant 0 : i32
    %c0_i32_0 = arith.constant 0 : i32
    %c0_i32_1 = arith.constant 0 : i32
    return %c0_i32, %c0_i32_0 : i32, i32
  }
  func.func @transform_3(%arg0: i32) -> (i32, i32) {
    %c0_i32 = arith.constant 0 : i32
    %c0_i32_0 = arith.constant 0 : i32
    %c0_i32_1 = arith.constant 0 : i32
    return %c0_i32, %c0_i32_0 : i32, i32
  }
  func.func @transform_4(%arg0: i32) -> (i32, i32) {
    %c0_i32 = arith.constant 0 : i32
    %c0_i32_0 = arith.constant 0 : i32
    %c0_i32_1 = arith.constant 0 : i32
    return %c0_i32, %c0_i32_0 : i32, i32
  }
  func.func @transform_5(%arg0: i32) -> (i32, i32) {
    %c0_i32 = arith.constant 0 : i32
    %c0_i32_0 = arith.constant 0 : i32
    %c0_i32_1 = arith.constant 0 : i32
    return %c0_i32, %c0_i32_0 : i32, i32
  }
  func.func @transform_6(%arg0: i32) -> (i32, i32) {
    %c0_i32 = arith.constant 0 : i32
    %c0_i32_0 = arith.constant 0 : i32
    %c0_i32_1 = arith.constant 0 : i32
    return %c0_i32, %c0_i32_0 : i32, i32
  }
  func.func @transform_7(%arg0: i32) -> (i32, i32) {
    %c0_i32 = arith.constant 0 : i32
    %c0_i32_0 = arith.constant 0 : i32
    %c0_i32_1 = arith.constant 0 : i32
    return %c0_i32, %c0_i32_0 : i32, i32
  }
  func.func @transform_8(%arg0: i32) -> (i32, i32) {
    %c0_i32 = arith.constant 0 : i32
    %c0_i32_0 = arith.constant 0 : i32
    return %arg0, %c0_i32 : i32, i32
  }
}

</mosaic_0001>

<llo_original>
// kernel: tpu_custom_call.1
$region0: #{tpu_custom_call.1}
  #allocation0 [shape = 'u32[]', space=smem, size = 0x4, offset = 0x4, fixed_abs, tag = 'smem constant byte address 0x4 - core index']
  #allocation1 [shape = 'u32[144,128]{1,0:T(1,128)}', space=vmem, size = 0x12000, scoped, tag = 'internal scratch']
  %s0 = inlined_call_operand.hbm [shape: f32[16,64], index: 0, kind: input, shape index: {}]
  %s1 = inlined_call_operand.hbm [shape: f32[64,128], index: 1, kind: input, shape index: {}]
  %s2 = inlined_call_operand.vmem [shape: f32[1,128], index: 2, kind: input, shape index: {}]
  %s3 = inlined_call_operand.hbm [shape: f32[128,128], index: 3, kind: input, shape index: {}]
  %s4 = inlined_call_operand.vmem [shape: f32[1,128], index: 4, kind: input, shape index: {}]
  %s5 = inlined_call_operand.hbm [shape: f32[128,128], index: 5, kind: input, shape index: {}]
  %s6 = inlined_call_operand.vmem [shape: f32[1,128], index: 6, kind: input, shape index: {}]
  %s7 = inlined_call_operand.hbm [shape: f32[128,128], index: 7, kind: input, shape index: {}]
  %s8 = inlined_call_operand.hbm [shape: f32[16,128], index: 8, kind: output, shape index: {}]
  %s9 = sld [smem:[#allocation0]]
  $region62: #{tpu_custom_call.1} parent=0
    _
  %s11 = ssub.s32 1, %s9
  %s12 = scalar_select 0, %s11, %s9
  $region1: #{tpu_custom_call.1} parent=0
    #allocation2 [shape = 'u8[8192]{0}', space=vmem, size = 0x2000, scoped, tag = 'input window, operand 0, single buffered']
    #allocation3 [shape = 's32[1]{0}', space=sflag, size = 0x4, scoped, tag = 'scoped memory for tpu_custom_call.1']
    #allocation4 [shape = 's32[1]{0}', space=sflag, size = 0x4, scoped, tag = 'scoped memory for tpu_custom_call.1']
    #allocation5 [shape = 'u8[32768]{0}', space=vmem, size = 0x8000, scoped, tag = 'input window, operand 1, single buffered']
    #allocation6 [shape = 's32[1]{0}', space=sflag, size = 0x4, scoped, tag = 'scoped memory for tpu_custom_call.1']
    #allocation7 [shape = 'u8[65536]{0}', space=vmem, size = 0x10000, scoped, tag = 'input window, operand 3, single buffered']
    #allocation8 [shape = 'u8[65536]{0}', space=vmem, size = 0x10000, scoped, tag = 'input window, operand 5, single buffered']
    #allocation9 [shape = 's32[1]{0}', space=sflag, size = 0x4, scoped, tag = 'scoped memory for tpu_custom_call.1']
    #allocation10 [shape = 'u8[65536]{0}', space=vmem, size = 0x10000, scoped, tag = 'input window, operand 7, single buffered']
    #allocation11 [shape = 'u8[8192]{0}', space=vmem, size = 0x2000, scoped, tag = 'output window, operand 0, single buffered']
    %13 = vsyncpa [#allocation3], 0
    %14 = vsyncpa [#allocation6], 0
    %15 = vsyncpa [#allocation9], 0
    %16 = vsyncpa [#allocation4], 0
    // Predicated region
    $region2: #{tpu_custom_call.1} parent=1 // pred_check
      _
    $region3: #{tpu_custom_call.1} parent=1 // pred_check_branch
      %18 = sbr.rel (0) target = $region5
    $region4: #{tpu_custom_call.1} parent=1 // pred_region
      %s20 = ssub.s32 256, 256
      %21 = vsyncadd [#allocation3], %s20
      %s22 = sshll.u32 [#allocation2], 4
      %s23 = int_to_ptr.vmem [resolvable:$true] %s22
      %28 = dma.hbm_to_vmem [thread:$0]  %s0, 256, %s23, [#allocation3], 128, 128, 8
    $region5: #{tpu_custom_call.1} parent=1 // pred_fallthru
      _
    // Predicated region
    $region6: #{tpu_custom_call.1} parent=1 // pred_check
      _
    $region7: #{tpu_custom_call.1} parent=1 // pred_check_branch
      %30 = sbr.rel (0) target = $region9
    $region8: #{tpu_custom_call.1} parent=1 // pred_region
      %s32 = ssub.s32 1024, 1024
      %33 = vsyncadd [#allocation6], %s32
      %s34 = sshll.u32 [#allocation5], 4
      %s35 = int_to_ptr.vmem [resolvable:$true] %s34
      %40 = dma.hbm_to_vmem [thread:$0]  %s1, 1024, %s35, [#allocation6], 128, 128, 8
    $region9: #{tpu_custom_call.1} parent=1 // pred_fallthru
      _
    // Predicated region
    $region10: #{tpu_custom_call.1} parent=1 // pred_check
      _
    $region11: #{tpu_custom_call.1} parent=1 // pred_check_branch
      %42 = sbr.rel (0) target = $region13
    $region12: #{tpu_custom_call.1} parent=1 // pred_region
      _
    $region13: #{tpu_custom_call.1} parent=1 // pred_fallthru
      _
    // Predicated region
    $region14: #{tpu_custom_call.1} parent=1 // pred_check
      _
    $region15: #{tpu_custom_call.1} parent=1 // pred_check_branch
      %44 = sbr.rel (0) target = $region17
    $region16: #{tpu_custom_call.1} parent=1 // pred_region
      %s46 = ssub.s32 2048, 2048
      %47 = vsyncadd [#allocation6], %s46
      %s48 = sshll.u32 [#allocation7], 4
      %s49 = int_to_ptr.vmem [resolvable:$true] %s48
      %54 = dma.hbm_to_vmem [thread:$0]  %s3, 2048, %s49, [#allocation6], 128, 128, 8
    $region17: #{tpu_custom_call.1} parent=1 // pred_fallthru
      _
    // Predicated region
    $region18: #{tpu_custom_call.1} parent=1 // pred_check
      _
    $region19: #{tpu_custom_call.1} parent=1 // pred_check_branch
      %56 = sbr.rel (0) target = $region21
    $region20: #{tpu_custom_call.1} parent=1 // pred_region
      _
    $region21: #{tpu_custom_call.1} parent=1 // pred_fallthru
      _
    // Predicated region
    $region22: #{tpu_custom_call.1} parent=1 // pred_check
      _
    $region23: #{tpu_custom_call.1} parent=1 // pred_check_branch
      %58 = sbr.rel (0) target = $region25
    $region24: #{tpu_custom_call.1} parent=1 // pred_region
      %s60 = ssub.s32 2048, 2048
      %61 = vsyncadd [#allocation9], %s60
      %s62 = sshll.u32 [#allocation8], 4
      %s63 = int_to_ptr.vmem [resolvable:$true] %s62
      %68 = dma.hbm_to_vmem [thread:$0]  %s5, 2048, %s63, [#allocation9], 128, 128, 8
    $region25: #{tpu_custom_call.1} parent=1 // pred_fallthru
      _
    // Predicated region
    $region26: #{tpu_custom_call.1} parent=1 // pred_check
      _
    $region27: #{tpu_custom_call.1} parent=1 // pred_check_branch
      %70 = sbr.rel (0) target = $region29
    $region28: #{tpu_custom_call.1} parent=1 // pred_region
      _
    $region29: #{tpu_custom_call.1} parent=1 // pred_fallthru
      _
    // Predicated region
    $region30: #{tpu_custom_call.1} parent=1 // pred_check
      _
    $region31: #{tpu_custom_call.1} parent=1 // pred_check_branch
      %72 = sbr.rel (0) target = $region33
    $region32: #{tpu_custom_call.1} parent=1 // pred_region
      %s74 = ssub.s32 2048, 2048
      %75 = vsyncadd [#allocation9], %s74
      %s76 = sshll.u32 [#allocation10], 4
      %s77 = int_to_ptr.vmem [resolvable:$true] %s76
      %82 = dma.hbm_to_vmem [thread:$0]  %s7, 2048, %s77, [#allocation9], 128, 128, 8
    $region33: #{tpu_custom_call.1} parent=1 // pred_fallthru
      _
    // Predicated region
    $region34: #{tpu_custom_call.1} parent=1 // pred_check
      _
    $region35: #{tpu_custom_call.1} parent=1 // pred_check_branch
      %84 = sbr.rel (0) target = $region37
    $region36: #{tpu_custom_call.1} parent=1 // pred_region
      %85 = dma.done [#allocation3], 256
    $region37: #{tpu_custom_call.1} parent=1 // pred_fallthru
      _
    // Predicated region
    $region38: #{tpu_custom_call.1} parent=1 // pred_check
      _
    $region39: #{tpu_custom_call.1} parent=1 // pred_check_branch
      %87 = sbr.rel (0) target = $region41
    $region40: #{tpu_custom_call.1} parent=1 // pred_region
      %88 = dma.done [#allocation6], 1024
    $region41: #{tpu_custom_call.1} parent=1 // pred_fallthru
      _
    // Predicated region
    $region42: #{tpu_custom_call.1} parent=1 // pred_check
      _
    $region43: #{tpu_custom_call.1} parent=1 // pred_check_branch
      %90 = sbr.rel (0) target = $region45
    $region44: #{tpu_custom_call.1} parent=1 // pred_region
      %91 = dma.done [#allocation6], 2048
    $region45: #{tpu_custom_call.1} parent=1 // pred_fallthru
      _
    // Predicated region
    $region46: #{tpu_custom_call.1} parent=1 // pred_check
      _
    $region47: #{tpu_custom_call.1} parent=1 // pred_check_branch
      %93 = sbr.rel (0) target = $region49
    $region48: #{tpu_custom_call.1} parent=1 // pred_region
      %94 = dma.done [#allocation9], 2048
    $region49: #{tpu_custom_call.1} parent=1 // pred_fallthru
      _
    // Predicated region
    $region50: #{tpu_custom_call.1} parent=1 // pred_check
      _
    $region51: #{tpu_custom_call.1} parent=1 // pred_check_branch
      %96 = sbr.rel (0) target = $region53
    $region52: #{tpu_custom_call.1} parent=1 // pred_region
      %97 = dma.done [#allocation9], 2048
    $region53: #{tpu_custom_call.1} parent=1 // pred_fallthru
      _
    %v98 = vld [vmem:[%s2] sm:$0x1]
    %v99 = vld [vmem:[%s4] sm:$0x1]
    %v100 = vld [vmem:[%s6] sm:$0x1]
    %v101 = vld [vmem:[#allocation10] sm:$0xff]
    %v102 = vld [vmem:[#allocation10 + $0x8] sm:$0xff]
    %v103 = vld [vmem:[#allocation10 + $0x10] sm:$0xff]
    %v104 = vld [vmem:[#allocation10 + $0x18] sm:$0xff]
    %v105 = vld [vmem:[#allocation10 + $0x20] sm:$0xff]
    %v106 = vld [vmem:[#allocation10 + $0x28] sm:$0xff]
    %v107 = vld [vmem:[#allocation10 + $0x30] sm:$0xff]
    %v108 = vld [vmem:[#allocation10 + $0x38] sm:$0xff]
    %v109 = vld [vmem:[#allocation10 + $0x40] sm:$0xff]
    %v110 = vld [vmem:[#allocation10 + $0x48] sm:$0xff]
    %v111 = vld [vmem:[#allocation10 + $0x50] sm:$0xff]
    %v112 = vld [vmem:[#allocation10 + $0x58] sm:$0xff]
    %v113 = vld [vmem:[#allocation10 + $0x60] sm:$0xff]
    %v114 = vld [vmem:[#allocation10 + $0x68] sm:$0xff]
    %v115 = vld [vmem:[#allocation10 + $0x70] sm:$0xff]
    %v116 = vld [vmem:[#allocation10 + $0x78] sm:$0xff]
    %v117 = vld [vmem:[#allocation2] sm:$0xff]
    %v118 = vld [vmem:[#allocation2 + $0x8] sm:$0xff]
    %v119 = vld [vmem:[#allocation5] sm:$0xff]
    %v120 = vld [vmem:[#allocation5 + $0x8] sm:$0xff]
    %v121 = vld [vmem:[#allocation5 + $0x10] sm:$0xff]
    %v122 = vld [vmem:[#allocation5 + $0x18] sm:$0xff]
    %v123 = vld [vmem:[#allocation5 + $0x20] sm:$0xff]
    %v124 = vld [vmem:[#allocation5 + $0x28] sm:$0xff]
    %v125 = vld [vmem:[#allocation5 + $0x30] sm:$0xff]
    %v126 = vld [vmem:[#allocation5 + $0x38] sm:$0xff]
    %v128 = vlaneseq
    %v129 = vshrl.u32 %v128, 7
    %v130 = vsub.s32 0, %v129
    %v131 = vrot.slane %v98, %v130
    %vm133 = vcmask 523264
    %v135 = vsel %vm133, %v117, 0
    %v138 = vsel %vm133, %v118, 0
    %140 = vmatprep.subr.mxu0 0.0
    %141 = vmatpush1.msra.mxu0 %v119
    %142 = vmatprep.subr.mxu0 0.0
    %143 = vmatpush1.msra.mxu0 %v120
    %144 = vmatprep.subr.mxu0 0.0
    %145 = vmatpush1.msra.mxu0 %v121
    %146 = vmatprep.subr.mxu0 0.0
    %147 = vmatpush1.msra.mxu0 %v122
    %148 = vmatprep.subr.mxu0 0.0
    %149 = vmatpush1.msra.mxu0 %v123
    %150 = vmatprep.subr.mxu0 0.0
    %151 = vmatpush1.msra.mxu0 %v124
    %152 = vmatprep.subr.mxu0 0.0
    %153 = vmatpush1.msra.mxu0 %v125
    %154 = vmatprep.subr.mxu0 0.0
    %155 = vmatpush1.msra.mxu0 %v126
    %156 = vmatprep.subr.mxu0 0.0
    %157 = vmatpush1.msra.mxu0 0.0
    %158 = vmatprep.subr.mxu0 0.0
    %159 = vmatpush1.msra.mxu0 0.0
    %160 = vmatprep.subr.mxu0 0.0
    %161 = vmatpush1.msra.mxu0 0.0
    %162 = vmatprep.subr.mxu0 0.0
    %163 = vmatpush1.msra.mxu0 0.0
    %164 = vmatprep.subr.mxu0 0.0
    %165 = vmatpush1.msra.mxu0 0.0
    %166 = vmatprep.subr.mxu0 0.0
    %167 = vmatpush1.msra.mxu0 0.0
    %168 = vmatprep.subr.mxu0 0.0
    %169 = vmatpush1.msra.mxu0 0.0
    %170 = vmatprep.subr.mxu0 0.0
    %171 = vmatpush1.msra.mxu0 0.0
    %172 = vmatprep.subr.mxu0 0.0
    %173 = vmatpush1.msra.mxu0 0.0
    %174 = vmatprep.subr.mxu0 0.0
    %175 = vmatpush1.msra.mxu0 0.0
    %176 = vmatprep.subr.mxu0 0.0
    %177 = vmatpush1.msra.mxu0 0.0
    %178 = vmatprep.subr.mxu0 0.0
    %179 = vmatpush1.msra.mxu0 0.0
    %180 = vmatprep.subr.mxu0 0.0
    %181 = vmatpush1.msra.mxu0 0.0
    %182 = vmatprep.subr.mxu0 0.0
    %183 = vmatpush1.msra.mxu0 0.0
    %184 = vmatprep.subr.mxu0 0.0
    %185 = vmatpush1.msra.mxu0 0.0
    %186 = vmatprep.subr.mxu0 0.0
    %187 = vmatpush1.msra.mxu0 0.0
    %188 = vmatprep.subr.mxu0 0.0
    %189 = vmatpush1.msra.mxu0 0.0
    %190 = vmatprep.subr.mxu0 0.0
    %191 = vmatpush1.msra.mxu0 0.0
    %192 = vmatprep.subr.mxu0 0.0
    %193 = vmatpush1.msra.mxu0 0.0
    %194 = vmatprep.subr.mxu0 0.0
    %195 = vmatpush1.msra.mxu0 0.0
    %196 = vmatprep.subr.mxu0 0.0
    %197 = vmatpush1.msra.mxu0 0.0
    %198 = vmatprep.subr.mxu0 0.0
    %199 = vmatpush1.msra.mxu0 0.0
    %200 = vmatprep.subr.mxu0 0.0
    %201 = vmatpush1.msra.mxu0 0.0
    %202 = vmatprep.subr.mxu0 0.0
    %203 = vmatpush1.msra.mxu0 0.0
    %204 = vmatprep.mubr.f32.mxu0 0.0
    %205 = vmatmul.mubr.f32.gmra.mrb[0].mxu0 %v135
    %v206 = vpop.f32.mrb[0].mxu0
    %v207 = vadd.f32 %v131, %v206
    %v208 = vpop.f32.mrb[0].mxu0
    %209 = vmatprep.mubr.f32.mxu0 0.0
    %210 = vmatmul.mubr.f32.gmra.mrb[0].mxu0 %v138
    %v211 = vpop.f32.mrb[0].mxu0
    %v212 = vadd.f32 %v131, %v211
    %v213 = vpop.f32.mrb[0].mxu0
    %214 = vdwg.mxu0
    %v215 = vmax.f32 %v207, 0.0
    %v216 = vmax.f32 %v212, 0.0
    %217 = vmatprep.subr.mxu0 0.0
    %218 = vmatpush1.msra.mxu0 %v101
    %219 = vmatprep.subr.mxu0 0.0
    %220 = vmatpush1.msra.mxu0 %v102
    %221 = vmatprep.subr.mxu0 0.0
    %222 = vmatpush1.msra.mxu0 %v103
    %223 = vmatprep.subr.mxu0 0.0
    %224 = vmatpush1.msra.mxu0 %v104
    %225 = vmatprep.subr.mxu0 0.0
    %226 = vmatpush1.msra.mxu0 %v105
    %227 = vmatprep.subr.mxu0 0.0
    %228 = vmatpush1.msra.mxu0 %v106
    %229 = vmatprep.subr.mxu0 0.0
    %230 = vmatpush1.msra.mxu0 %v107
    %231 = vmatprep.subr.mxu0 0.0
    %232 = vmatpush1.msra.mxu0 %v108
    %233 = vmatprep.subr.mxu0 0.0
    %234 = vmatpush1.msra.mxu0 %v109
    %235 = vmatprep.subr.mxu0 0.0
    %236 = vmatpush1.msra.mxu0 %v110
    %237 = vmatprep.subr.mxu0 0.0
    %238 = vmatpush1.msra.mxu0 %v111
    %239 = vmatprep.subr.mxu0 0.0
    %240 = vmatpush1.msra.mxu0 %v112
    %241 = vmatprep.subr.mxu0 0.0
    %242 = vmatpush1.msra.mxu0 %v113
    %243 = vmatprep.subr.mxu0 0.0
    %244 = vmatpush1.msra.mxu0 %v114
    %245 = vmatprep.subr.mxu0 0.0
    %246 = vmatpush1.msra.mxu0 %v115
    %247 = vmatprep.subr.mxu0 0.0
    %248 = vmatpush1.msra.mxu0 %v116
    %249 = vmatprep.subr.mxu0 0.0
    %250 = vmatpush1.msra.mxu0 0.0
    %251 = vmatprep.subr.mxu0 0.0
    %252 = vmatpush1.msra.mxu0 0.0
    %253 = vmatprep.subr.mxu0 0.0
    %254 = vmatpush1.msra.mxu0 0.0
    %255 = vmatprep.subr.mxu0 0.0
    %256 = vmatpush1.msra.mxu0 0.0
    %257 = vmatprep.subr.mxu0 0.0
    %258 = vmatpush1.msra.mxu0 0.0
    %259 = vmatprep.subr.mxu0 0.0
    %260 = vmatpush1.msra.mxu0 0.0
    %261 = vmatprep.subr.mxu0 0.0
    %262 = vmatpush1.msra.mxu0 0.0
    %263 = vmatprep.subr.mxu0 0.0
    %264 = vmatpush1.msra.mxu0 0.0
    %265 = vmatprep.subr.mxu0 0.0
    %266 = vmatpush1.msra.mxu0 0.0
    %267 = vmatprep.subr.mxu0 0.0
    %268 = vmatpush1.msra.mxu0 0.0
    %269 = vmatprep.subr.mxu0 0.0
    %270 = vmatpush1.msra.mxu0 0.0
    %271 = vmatprep.subr.mxu0 0.0
    %272 = vmatpush1.msra.mxu0 0.0
    %273 = vmatprep.subr.mxu0 0.0
    %274 = vmatpush1.msra.mxu0 0.0
    %275 = vmatprep.subr.mxu0 0.0
    %276 = vmatpush1.msra.mxu0 0.0
    %277 = vmatprep.subr.mxu0 0.0
    %278 = vmatpush1.msra.mxu0 0.0
    %279 = vmatprep.subr.mxu0 0.0
    %280 = vmatpush1.msra.mxu0 0.0
    %281 = vmatprep.mubr.f32.mxu0 0.0
    %282 = vmatmul.mubr.f32.gmra.mrb[0].mxu0 %v215
    %v283 = vpop.f32.mrb[0].mxu0
    %v284 = vadd.f32 0.0, %v283
    %v285 = vpop.f32.mrb[0].mxu0
    %286 = vmatprep.mubr.f32.mxu0 0.0
    %287 = vmatmul.mubr.f32.gmra.mrb[0].mxu0 %v216
    %v288 = vpop.f32.mrb[0].mxu0
    %v289 = vadd.f32 0.0, %v288
    %v290 = vpop.f32.mrb[0].mxu0
    %291 = vdwg.mxu0
    %v292 = vsub.f32 %v215, %v284
    %v293 = vsub.f32 %v216, %v289
    %v294 = vmul.f32 %v292, %v292
    %v295 = vmul.f32 %v293, %v293
    %296 = vmatprep.subr.mxu0 0.0
    %297 = vmatpush1.msra.mxu0 %v101
    %298 = vmatprep.subr.mxu0 0.0
    %299 = vmatpush1.msra.mxu0 %v102
    %300 = vmatprep.subr.mxu0 0.0
    %301 = vmatpush1.msra.mxu0 %v103
    %302 = vmatprep.subr.mxu0 0.0
    %303 = vmatpush1.msra.mxu0 %v104
    %304 = vmatprep.subr.mxu0 0.0
    %305 = vmatpush1.msra.mxu0 %v105
    %306 = vmatprep.subr.mxu0 0.0
    %307 = vmatpush1.msra.mxu0 %v106
    %308 = vmatprep.subr.mxu0 0.0
    %309 = vmatpush1.msra.mxu0 %v107
    %310 = vmatprep.subr.mxu0 0.0
    %311 = vmatpush1.msra.mxu0 %v108
    %312 = vmatprep.subr.mxu0 0.0
    %313 = vmatpush1.msra.mxu0 %v109
    %314 = vmatprep.subr.mxu0 0.0
    %315 = vmatpush1.msra.mxu0 %v110
    %316 = vmatprep.subr.mxu0 0.0
    %317 = vmatpush1.msra.mxu0 %v111
    %318 = vmatprep.subr.mxu0 0.0
    %319 = vmatpush1.msra.mxu0 %v112
    %320 = vmatprep.subr.mxu0 0.0
    %321 = vmatpush1.msra.mxu0 %v113
    %322 = vmatprep.subr.mxu0 0.0
    %323 = vmatpush1.msra.mxu0 %v114
    %324 = vmatprep.subr.mxu0 0.0
    %325 = vmatpush1.msra.mxu0 %v115
    %326 = vmatprep.subr.mxu0 0.0
    %327 = vmatpush1.msra.mxu0 %v116
    %328 = vmatprep.subr.mxu0 0.0
    %329 = vmatpush1.msra.mxu0 0.0
    %330 = vmatprep.subr.mxu0 0.0
    %331 = vmatpush1.msra.mxu0 0.0
    %332 = vmatprep.subr.mxu0 0.0
    %333 = vmatpush1.msra.mxu0 0.0
    %334 = vmatprep.subr.mxu0 0.0
    %335 = vmatpush1.msra.mxu0 0.0
    %336 = vmatprep.subr.mxu0 0.0
    %337 = vmatpush1.msra.mxu0 0.0
    %338 = vmatprep.subr.mxu0 0.0
    %339 = vmatpush1.msra.mxu0 0.0
    %340 = vmatprep.subr.mxu0 0.0
    %341 = vmatpush1.msra.mxu0 0.0
    %342 = vmatprep.subr.mxu0 0.0
    %343 = vmatpush1.msra.mxu0 0.0
    %344 = vmatprep.subr.mxu0 0.0
    %345 = vmatpush1.msra.mxu0 0.0
    %346 = vmatprep.subr.mxu0 0.0
    %347 = vmatpush1.msra.mxu0 0.0
    %348 = vmatprep.subr.mxu0 0.0
    %349 = vmatpush1.msra.mxu0 0.0
    %350 = vmatprep.subr.mxu0 0.0
    %351 = vmatpush1.msra.mxu0 0.0
    %352 = vmatprep.subr.mxu0 0.0
    %353 = vmatpush1.msra.mxu0 0.0
    %354 = vmatprep.subr.mxu0 0.0
    %355 = vmatpush1.msra.mxu0 0.0
    %356 = vmatprep.subr.mxu0 0.0
    %357 = vmatpush1.msra.mxu0 0.0
    %358 = vmatprep.subr.mxu0 0.0
    %359 = vmatpush1.msra.mxu0 0.0
    %360 = vmatprep.mubr.f32.mxu0 0.0
    %361 = vmatmul.mubr.f32.gmra.mrb[0].mxu0 %v294
    %v362 = vpop.f32.mrb[0].mxu0
    %v363 = vadd.f32 1e-05, %v362
    %v364 = vpop.f32.mrb[0].mxu0
    %365 = vmatprep.mubr.f32.mxu0 0.0
    %366 = vmatmul.mubr.f32.gmra.mrb[0].mxu0 %v295
    %v367 = vpop.f32.mrb[0].mxu0
    %v368 = vadd.f32 1e-05, %v367
    %v369 = vpop.f32.mrb[0].mxu0
    %370 = vdwg.mxu0
    %v371 = vrsqrt.pop %v363
    %v372 = vrsqrt.pop %v368
    %v373 = vmul.f32 %v292, %v371
    %v374 = vmul.f32 %v293, %v372
    %v375 = vld [vmem:[#allocation7] sm:$0xff]
    %v376 = vld [vmem:[#allocation7 + $0x8] sm:$0xff]
    %v377 = vld [vmem:[#allocation7 + $0x10] sm:$0xff]
    %v378 = vld [vmem:[#allocation7 + $0x18] sm:$0xff]
    %v379 = vld [vmem:[#allocation7 + $0x20] sm:$0xff]
    %v380 = vld [vmem:[#allocation7 + $0x28] sm:$0xff]
    %v381 = vld [vmem:[#allocation7 + $0x30] sm:$0xff]
    %v382 = vld [vmem:[#allocation7 + $0x38] sm:$0xff]
    %v383 = vld [vmem:[#allocation7 + $0x40] sm:$0xff]
    %v384 = vld [vmem:[#allocation7 + $0x48] sm:$0xff]
    %v385 = vld [vmem:[#allocation7 + $0x50] sm:$0xff]
    %v386 = vld [vmem:[#allocation7 + $0x58] sm:$0xff]
    %v387 = vld [vmem:[#allocation7 + $0x60] sm:$0xff]
    %v388 = vld [vmem:[#allocation7 + $0x68] sm:$0xff]
    %v389 = vld [vmem:[#allocation7 + $0x70] sm:$0xff]
    %v390 = vld [vmem:[#allocation7 + $0x78] sm:$0xff]
    %v392 = vlaneseq
    %v393 = vshrl.u32 %v392, 7
    %v394 = vsub.s32 0, %v393
    %v395 = vrot.slane %v99, %v394
    %397 = vmatprep.subr.mxu0 0.0
    %398 = vmatpush1.msra.mxu0 %v375
    %399 = vmatprep.subr.mxu0 0.0
    %400 = vmatpush1.msra.mxu0 %v376
    %401 = vmatprep.subr.mxu0 0.0
    %402 = vmatpush1.msra.mxu0 %v377
    %403 = vmatprep.subr.mxu0 0.0
    %404 = vmatpush1.msra.mxu0 %v378
    %405 = vmatprep.subr.mxu0 0.0
    %406 = vmatpush1.msra.mxu0 %v379
    %407 = vmatprep.subr.mxu0 0.0
    %408 = vmatpush1.msra.mxu0 %v380
    %409 = vmatprep.subr.mxu0 0.0
    %410 = vmatpush1.msra.mxu0 %v381
    %411 = vmatprep.subr.mxu0 0.0
    %412 = vmatpush1.msra.mxu0 %v382
    %413 = vmatprep.subr.mxu0 0.0
    %414 = vmatpush1.msra.mxu0 %v383
    %415 = vmatprep.subr.mxu0 0.0
    %416 = vmatpush1.msra.mxu0 %v384
    %417 = vmatprep.subr.mxu0 0.0
    %418 = vmatpush1.msra.mxu0 %v385
    %419 = vmatprep.subr.mxu0 0.0
    %420 = vmatpush1.msra.mxu0 %v386
    %421 = vmatprep.subr.mxu0 0.0
    %422 = vmatpush1.msra.mxu0 %v387
    %423 = vmatprep.subr.mxu0 0.0
    %424 = vmatpush1.msra.mxu0 %v388
    %425 = vmatprep.subr.mxu0 0.0
    %426 = vmatpush1.msra.mxu0 %v389
    %427 = vmatprep.subr.mxu0 0.0
    %428 = vmatpush1.msra.mxu0 %v390
    %429 = vmatprep.subr.mxu0 0.0
    %430 = vmatpush1.msra.mxu0 0.0
    %431 = vmatprep.subr.mxu0 0.0
    %432 = vmatpush1.msra.mxu0 0.0
    %433 = vmatprep.subr.mxu0 0.0
    %434 = vmatpush1.msra.mxu0 0.0
    %435 = vmatprep.subr.mxu0 0.0
    %436 = vmatpush1.msra.mxu0 0.0
    %437 = vmatprep.subr.mxu0 0.0
    %438 = vmatpush1.msra.mxu0 0.0
    %439 = vmatprep.subr.mxu0 0.0
    %440 = vmatpush1.msra.mxu0 0.0
    %441 = vmatprep.subr.mxu0 0.0
    %442 = vmatpush1.msra.mxu0 0.0
    %443 = vmatprep.subr.mxu0 0.0
    %444 = vmatpush1.msra.mxu0 0.0
    %445 = vmatprep.subr.mxu0 0.0
    %446 = vmatpush1.msra.mxu0 0.0
    %447 = vmatprep.subr.mxu0 0.0
    %448 = vmatpush1.msra.mxu0 0.0
    %449 = vmatprep.subr.mxu0 0.0
    %450 = vmatpush1.msra.mxu0 0.0
    %451 = vmatprep.subr.mxu0 0.0
    %452 = vmatpush1.msra.mxu0 0.0
    %453 = vmatprep.subr.mxu0 0.0
    %454 = vmatpush1.msra.mxu0 0.0
    %455 = vmatprep.subr.mxu0 0.0
    %456 = vmatpush1.msra.mxu0 0.0
    %457 = vmatprep.subr.mxu0 0.0
    %458 = vmatpush1.msra.mxu0 0.0
    %459 = vmatprep.subr.mxu0 0.0
    %460 = vmatpush1.msra.mxu0 0.0
    %461 = vmatprep.mubr.f32.mxu0 0.0
    %462 = vmatmul.mubr.f32.gmra.mrb[0].mxu0 %v373
    %v463 = vpop.f32.mrb[0].mxu0
    %v464 = vadd.f32 %v395, %v463
    %v465 = vpop.f32.mrb[0].mxu0
    %466 = vmatprep.mubr.f32.mxu0 0.0
    %467 = vmatmul.mubr.f32.gmra.mrb[0].mxu0 %v374
    %v468 = vpop.f32.mrb[0].mxu0
    %v469 = vadd.f32 %v395, %v468
    %v470 = vpop.f32.mrb[0].mxu0
    %471 = vdwg.mxu0
    %v472 = vmax.f32 %v464, 0.0
    %v473 = vmax.f32 %v469, 0.0
    %474 = vmatprep.subr.mxu0 0.0
    %475 = vmatpush1.msra.mxu0 %v101
    %476 = vmatprep.subr.mxu0 0.0
    %477 = vmatpush1.msra.mxu0 %v102
    %478 = vmatprep.subr.mxu0 0.0
    %479 = vmatpush1.msra.mxu0 %v103
    %480 = vmatprep.subr.mxu0 0.0
    %481 = vmatpush1.msra.mxu0 %v104
    %482 = vmatprep.subr.mxu0 0.0
    %483 = vmatpush1.msra.mxu0 %v105
    %484 = vmatprep.subr.mxu0 0.0
    %485 = vmatpush1.msra.mxu0 %v106
    %486 = vmatprep.subr.mxu0 0.0
    %487 = vmatpush1.msra.mxu0 %v107
    %488 = vmatprep.subr.mxu0 0.0
    %489 = vmatpush1.msra.mxu0 %v108
    %490 = vmatprep.subr.mxu0 0.0
    %491 = vmatpush1.msra.mxu0 %v109
    %492 = vmatprep.subr.mxu0 0.0
    %493 = vmatpush1.msra.mxu0 %v110
    %494 = vmatprep.subr.mxu0 0.0
    %495 = vmatpush1.msra.mxu0 %v111
    %496 = vmatprep.subr.mxu0 0.0
    %497 = vmatpush1.msra.mxu0 %v112
    %498 = vmatprep.subr.mxu0 0.0
    %499 = vmatpush1.msra.mxu0 %v113
    %500 = vmatprep.subr.mxu0 0.0
    %501 = vmatpush1.msra.mxu0 %v114
    %502 = vmatprep.subr.mxu0 0.0
    %503 = vmatpush1.msra.mxu0 %v115
    %504 = vmatprep.subr.mxu0 0.0
    %505 = vmatpush1.msra.mxu0 %v116
    %506 = vmatprep.subr.mxu0 0.0
    %507 = vmatpush1.msra.mxu0 0.0
    %508 = vmatprep.subr.mxu0 0.0
    %509 = vmatpush1.msra.mxu0 0.0
    %510 = vmatprep.subr.mxu0 0.0
    %511 = vmatpush1.msra.mxu0 0.0
    %512 = vmatprep.subr.mxu0 0.0
    %513 = vmatpush1.msra.mxu0 0.0
    %514 = vmatprep.subr.mxu0 0.0
    %515 = vmatpush1.msra.mxu0 0.0
    %516 = vmatprep.subr.mxu0 0.0
    %517 = vmatpush1.msra.mxu0 0.0
    %518 = vmatprep.subr.mxu0 0.0
    %519 = vmatpush1.msra.mxu0 0.0
    %520 = vmatprep.subr.mxu0 0.0
    %521 = vmatpush1.msra.mxu0 0.0
    %522 = vmatprep.subr.mxu0 0.0
    %523 = vmatpush1.msra.mxu0 0.0
    %524 = vmatprep.subr.mxu0 0.0
    %525 = vmatpush1.msra.mxu0 0.0
    %526 = vmatprep.subr.mxu0 0.0
    %527 = vmatpush1.msra.mxu0 0.0
    %528 = vmatprep.subr.mxu0 0.0
    %529 = vmatpush1.msra.mxu0 0.0
    %530 = vmatprep.subr.mxu0 0.0
    %531 = vmatpush1.msra.mxu0 0.0
    %532 = vmatprep.subr.mxu0 0.0
    %533 = vmatpush1.msra.mxu0 0.0
    %534 = vmatprep.subr.mxu0 0.0
    %535 = vmatpush1.msra.mxu0 0.0
    %536 = vmatprep.subr.mxu0 0.0
    %537 = vmatpush1.msra.mxu0 0.0
    %538 = vmatprep.mubr.f32.mxu0 0.0
    %539 = vmatmul.mubr.f32.gmra.mrb[0].mxu0 %v472
    %v540 = vpop.f32.mrb[0].mxu0
    %v541 = vadd.f32 0.0, %v540
    %v542 = vpop.f32.mrb[0].mxu0
    %543 = vmatprep.mubr.f32.mxu0 0.0
    %544 = vmatmul.mubr.f32.gmra.mrb[0].mxu0 %v473
    %v545 = vpop.f32.mrb[0].mxu0
    %v546 = vadd.f32 0.0, %v545
    %v547 = vpop.f32.mrb[0].mxu0
    %548 = vdwg.mxu0
    %v549 = vsub.f32 %v472, %v541
    %v550 = vsub.f32 %v473, %v546
    %v551 = vmul.f32 %v549, %v549
    %v552 = vmul.f32 %v550, %v550
    %553 = vmatprep.subr.mxu0 0.0
    %554 = vmatpush1.msra.mxu0 %v101
    %555 = vmatprep.subr.mxu0 0.0
    %556 = vmatpush1.msra.mxu0 %v102
    %557 = vmatprep.subr.mxu0 0.0
    %558 = vmatpush1.msra.mxu0 %v103
    %559 = vmatprep.subr.mxu0 0.0
    %560 = vmatpush1.msra.mxu0 %v104
    %561 = vmatprep.subr.mxu0 0.0
    %562 = vmatpush1.msra.mxu0 %v105
    %563 = vmatprep.subr.mxu0 0.0
    %564 = vmatpush1.msra.mxu0 %v106
    %565 = vmatprep.subr.mxu0 0.0
    %566 = vmatpush1.msra.mxu0 %v107
    %567 = vmatprep.subr.mxu0 0.0
    %568 = vmatpush1.msra.mxu0 %v108
    %569 = vmatprep.subr.mxu0 0.0
    %570 = vmatpush1.msra.mxu0 %v109
    %571 = vmatprep.subr.mxu0 0.0
    %572 = vmatpush1.msra.mxu0 %v110
    %573 = vmatprep.subr.mxu0 0.0
    %574 = vmatpush1.msra.mxu0 %v111
    %575 = vmatprep.subr.mxu0 0.0
    %576 = vmatpush1.msra.mxu0 %v112
    %577 = vmatprep.subr.mxu0 0.0
    %578 = vmatpush1.msra.mxu0 %v113
    %579 = vmatprep.subr.mxu0 0.0
    %580 = vmatpush1.msra.mxu0 %v114
    %581 = vmatprep.subr.mxu0 0.0
    %582 = vmatpush1.msra.mxu0 %v115
    %583 = vmatprep.subr.mxu0 0.0
    %584 = vmatpush1.msra.mxu0 %v116
    %585 = vmatprep.subr.mxu0 0.0
    %586 = vmatpush1.msra.mxu0 0.0
    %587 = vmatprep.subr.mxu0 0.0
    %588 = vmatpush1.msra.mxu0 0.0
    %589 = vmatprep.subr.mxu0 0.0
    %590 = vmatpush1.msra.mxu0 0.0
    %591 = vmatprep.subr.mxu0 0.0
    %592 = vmatpush1.msra.mxu0 0.0
    %593 = vmatprep.subr.mxu0 0.0
    %594 = vmatpush1.msra.mxu0 0.0
    %595 = vmatprep.subr.mxu0 0.0
    %596 = vmatpush1.msra.mxu0 0.0
    %597 = vmatprep.subr.mxu0 0.0
    %598 = vmatpush1.msra.mxu0 0.0
    %599 = vmatprep.subr.mxu0 0.0
    %600 = vmatpush1.msra.mxu0 0.0
    %601 = vmatprep.subr.mxu0 0.0
    %602 = vmatpush1.msra.mxu0 0.0
    %603 = vmatprep.subr.mxu0 0.0
    %604 = vmatpush1.msra.mxu0 0.0
    %605 = vmatprep.subr.mxu0 0.0
    %606 = vmatpush1.msra.mxu0 0.0
    %607 = vmatprep.subr.mxu0 0.0
    %608 = vmatpush1.msra.mxu0 0.0
    %609 = vmatprep.subr.mxu0 0.0
    %610 = vmatpush1.msra.mxu0 0.0
    %611 = vmatprep.subr.mxu0 0.0
    %612 = vmatpush1.msra.mxu0 0.0
    %613 = vmatprep.subr.mxu0 0.0
    %614 = vmatpush1.msra.mxu0 0.0
    %615 = vmatprep.subr.mxu0 0.0
    %616 = vmatpush1.msra.mxu0 0.0
    %617 = vmatprep.mubr.f32.mxu0 0.0
    %618 = vmatmul.mubr.f32.gmra.mrb[0].mxu0 %v551
    %v619 = vpop.f32.mrb[0].mxu0
    %v620 = vadd.f32 1e-05, %v619
    %v621 = vpop.f32.mrb[0].mxu0
    %622 = vmatprep.mubr.f32.mxu0 0.0
    %623 = vmatmul.mubr.f32.gmra.mrb[0].mxu0 %v552
    %v624 = vpop.f32.mrb[0].mxu0
    %v625 = vadd.f32 1e-05, %v624
    %v626 = vpop.f32.mrb[0].mxu0
    %627 = vdwg.mxu0
    %v628 = vrsqrt.pop %v620
    %v629 = vrsqrt.pop %v625
    %v630 = vmul.f32 %v549, %v628
    %v631 = vmul.f32 %v550, %v629
    %v632 = vld [vmem:[#allocation8] sm:$0xff]
    %v633 = vld [vmem:[#allocation8 + $0x8] sm:$0xff]
    %v634 = vld [vmem:[#allocation8 + $0x10] sm:$0xff]
    %v635 = vld [vmem:[#allocation8 + $0x18] sm:$0xff]
    %v636 = vld [vmem:[#allocation8 + $0x20] sm:$0xff]
    %v637 = vld [vmem:[#allocation8 + $0x28] sm:$0xff]
    %v638 = vld [vmem:[#allocation8 + $0x30] sm:$0xff]
    %v639 = vld [vmem:[#allocation8 + $0x38] sm:$0xff]
    %v640 = vld [vmem:[#allocation8 + $0x40] sm:$0xff]
    %v641 = vld [vmem:[#allocation8 + $0x48] sm:$0xff]
    %v642 = vld [vmem:[#allocation8 + $0x50] sm:$0xff]
    %v643 = vld [vmem:[#allocation8 + $0x58] sm:$0xff]
    %v644 = vld [vmem:[#allocation8 + $0x60] sm:$0xff]
    %v645 = vld [vmem:[#allocation8 + $0x68] sm:$0xff]
    %v646 = vld [vmem:[#allocation8 + $0x70] sm:$0xff]
    %v647 = vld [vmem:[#allocation8 + $0x78] sm:$0xff]
    %v649 = vlaneseq
    %v650 = vshrl.u32 %v649, 7
    %v651 = vsub.s32 0, %v650
    %v652 = vrot.slane %v100, %v651
    %654 = vmatprep.subr.mxu0 0.0
    %655 = vmatpush1.msra.mxu0 %v632
    %656 = vmatprep.subr.mxu0 0.0
    %657 = vmatpush1.msra.mxu0 %v633
    %658 = vmatprep.subr.mxu0 0.0
    %659 = vmatpush1.msra.mxu0 %v634
    %660 = vmatprep.subr.mxu0 0.0
    %661 = vmatpush1.msra.mxu0 %v635
    %662 = vmatprep.subr.mxu0 0.0
    %663 = vmatpush1.msra.mxu0 %v636
    %664 = vmatprep.subr.mxu0 0.0
    %665 = vmatpush1.msra.mxu0 %v637
    %666 = vmatprep.subr.mxu0 0.0
    %667 = vmatpush1.msra.mxu0 %v638
    %668 = vmatprep.subr.mxu0 0.0
    %669 = vmatpush1.msra.mxu0 %v639
    %670 = vmatprep.subr.mxu0 0.0
    %671 = vmatpush1.msra.mxu0 %v640
    %672 = vmatprep.subr.mxu0 0.0
    %673 = vmatpush1.msra.mxu0 %v641
    %674 = vmatprep.subr.mxu0 0.0
    %675 = vmatpush1.msra.mxu0 %v642
    %676 = vmatprep.subr.mxu0 0.0
    %677 = vmatpush1.msra.mxu0 %v643
    %678 = vmatprep.subr.mxu0 0.0
    %679 = vmatpush1.msra.mxu0 %v644
    %680 = vmatprep.subr.mxu0 0.0
    %681 = vmatpush1.msra.mxu0 %v645
    %682 = vmatprep.subr.mxu0 0.0
    %683 = vmatpush1.msra.mxu0 %v646
    %684 = vmatprep.subr.mxu0 0.0
    %685 = vmatpush1.msra.mxu0 %v647
    %686 = vmatprep.subr.mxu0 0.0
    %687 = vmatpush1.msra.mxu0 0.0
    %688 = vmatprep.subr.mxu0 0.0
    %689 = vmatpush1.msra.mxu0 0.0
    %690 = vmatprep.subr.mxu0 0.0
    %691 = vmatpush1.msra.mxu0 0.0
    %692 = vmatprep.subr.mxu0 0.0
    %693 = vmatpush1.msra.mxu0 0.0
    %694 = vmatprep.subr.mxu0 0.0
    %695 = vmatpush1.msra.mxu0 0.0
    %696 = vmatprep.subr.mxu0 0.0
    %697 = vmatpush1.msra.mxu0 0.0
    %698 = vmatprep.subr.mxu0 0.0
    %699 = vmatpush1.msra.mxu0 0.0
    %700 = vmatprep.subr.mxu0 0.0
    %701 = vmatpush1.msra.mxu0 0.0
    %702 = vmatprep.subr.mxu0 0.0
    %703 = vmatpush1.msra.mxu0 0.0
    %704 = vmatprep.subr.mxu0 0.0
    %705 = vmatpush1.msra.mxu0 0.0
    %706 = vmatprep.subr.mxu0 0.0
    %707 = vmatpush1.msra.mxu0 0.0
    %708 = vmatprep.subr.mxu0 0.0
    %709 = vmatpush1.msra.mxu0 0.0
    %710 = vmatprep.subr.mxu0 0.0
    %711 = vmatpush1.msra.mxu0 0.0
    %712 = vmatprep.subr.mxu0 0.0
    %713 = vmatpush1.msra.mxu0 0.0
    %714 = vmatprep.subr.mxu0 0.0
    %715 = vmatpush1.msra.mxu0 0.0
    %716 = vmatprep.subr.mxu0 0.0
    %717 = vmatpush1.msra.mxu0 0.0
    %718 = vmatprep.mubr.f32.mxu0 0.0
    %719 = vmatmul.mubr.f32.gmra.mrb[0].mxu0 %v630
    %v720 = vpop.f32.mrb[0].mxu0
    %v721 = vadd.f32 %v652, %v720
    %v722 = vpop.f32.mrb[0].mxu0
    %723 = vmatprep.mubr.f32.mxu0 0.0
    %724 = vmatmul.mubr.f32.gmra.mrb[0].mxu0 %v631
    %v725 = vpop.f32.mrb[0].mxu0
    %v726 = vadd.f32 %v652, %v725
    %v727 = vpop.f32.mrb[0].mxu0
    %728 = vdwg.mxu0
    %729 = vst [vmem:[#allocation11] sm:$0xff] %v721
    %730 = vst [vmem:[#allocation11 + $0x8] sm:$0xff] %v726
    // Predicated region
    $region54: #{tpu_custom_call.1} parent=1 // pred_check
      _
    $region55: #{tpu_custom_call.1} parent=1 // pred_check_branch
      %732 = sbr.rel (0) target = $region57
    $region56: #{tpu_custom_call.1} parent=1 // pred_region
      %s734 = ssub.s32 256, 256
      %735 = vsyncadd [#allocation4], %s734
      %s736 = sshll.u32 [#allocation11], 4
      %s737 = int_to_ptr.vmem [resolvable:$true] %s736
      %742 = dma.vmem_to_hbm [thread:$0]  %s737, 256, %s8, [#allocation4], 128, 128, 8
    $region57: #{tpu_custom_call.1} parent=1 // pred_fallthru
      _
    // Predicated region
    $region58: #{tpu_custom_call.1} parent=1 // pred_check
      _
    $region59: #{tpu_custom_call.1} parent=1 // pred_check_branch
      %744 = sbr.rel (0) target = $region61
    $region60: #{tpu_custom_call.1} parent=1 // pred_region
      %745 = dma.done [#allocation4], 256
    $region61: #{tpu_custom_call.1} parent=1 // pred_fallthru
      _
    %746 = vsyncpa [#allocation3], 1
    %747 = vsyncpa [#allocation6], 1
    %748 = vsyncpa [#allocation9], 1
    %749 = vsyncpa [#allocation4], 1

</llo_original>
